<compile_context>
chip_gen: v6e
topology: v6e:2x2x1
jax: 0.10.0
libtpu: 0.0.40
codegen_flags: <defaults>
</compile_context>

<pallas_src>
import jax
import jax.numpy as jnp
from jax.experimental import pallas as pl
from jax.experimental.pallas import tpu as pltpu


def _dual_linear_kernel(a_ref, b_ref, w1_ref, w2_ref, bias_ref, o_ref):
    # o = a @ w1 + b @ w2 + (bias1 + bias2), fully fused in VMEM.
    acc = jnp.dot(
        a_ref[...], w1_ref[...],
        preferred_element_type=jnp.float32,
        precision=jax.lax.Precision.HIGHEST,
    )
    acc = acc + jnp.dot(
        b_ref[...], w2_ref[...],
        preferred_element_type=jnp.float32,
        precision=jax.lax.Precision.HIGHEST,
    )
    o_ref[...] = (acc + bias_ref[...]).astype(o_ref.dtype)


def mem_planning_with_scratch_tensor(a, b, w1, w2, bias_sum, *, block_m=1024):
    """a, b: (M, K) f32.  w1, w2: (K, N) f32 (already transposed vs PyTorch's
    (N, K) layout).  bias_sum: (1, N) f32 = bias1 + bias2 (one-time fusion).
    Returns (M, N) f32 == linear1(a) + linear2(b)."""
    M, K = a.shape
    Kw, N = w1.shape
    assert Kw == K and w2.shape == (K, N) and bias_sum.shape == (1, N)

    if M <= block_m:
        # Single grid step; block == full array, so the (8,128) divisibility
        # rule is satisfied regardless of M (e.g. M = 10).
        bm = M
    else:
        # Multiple of 8; ragged last tile is masked by Pallas automatically
        # (row-wise op, no reduction across M, so padded rows are discarded).
        bm = block_m
    grid = (pl.cdiv(M, bm),)

    return pl.pallas_call(
        _dual_linear_kernel,
        out_shape=jax.ShapeDtypeStruct((M, N), jnp.float32),
        grid=grid,
        in_specs=[
            pl.BlockSpec((bm, K), lambda i: (i, 0)),   # a tile   (streamed over M)
            pl.BlockSpec((bm, K), lambda i: (i, 0)),   # b tile   (streamed over M)
            pl.BlockSpec((K, N), lambda i: (0, 0)),    # w1       (resident)
            pl.BlockSpec((K, N), lambda i: (0, 0)),    # w2       (resident)
            pl.BlockSpec((1, N), lambda i: (0, 0)),    # fused bias (resident)
        ],
        out_specs=pl.BlockSpec((bm, N), lambda i: (i, 0)),
        compiler_params=pltpu.CompilerParams(
            dimension_semantics=("parallel",),
        ),
    )(a, b, w1, w2, bias_sum)


def reference(a, b, w1, bias1, w2, bias2):
    return a @ w1 + bias1 + b @ w2 + bias2


if __name__ == "__main__":
    key = jax.random.PRNGKey(0)
    k_a, k_b, k_w1, k_b1, k_w2, k_b2 = jax.random.split(key, 6)

    M, K, N = 10, 4, 2  # matches get_random_inputs(): (10, 4) inputs, Linear(4, 2)

    # Inputs
    a = jax.random.normal(k_a, (M, K), dtype=jnp.float32)
    b = jax.random.normal(k_b, (M, K), dtype=jnp.float32)

    # Deterministic parameter init (mimic nn.Linear uniform(-1/sqrt(K), 1/sqrt(K))),
    # stored pre-transposed: (in_features, out_features).
    bound = 1.0 / (K ** 0.5)
    w1 = jax.random.uniform(k_w1, (K, N), minval=-bound, maxval=bound, dtype=jnp.float32)
    bias1 = jax.random.uniform(k_b1, (1, N), minval=-bound, maxval=bound, dtype=jnp.float32)
    w2 = jax.random.uniform(k_w2, (K, N), minval=-bound, maxval=bound, dtype=jnp.float32)
    bias2 = jax.random.uniform(k_b2, (1, N), minval=-bound, maxval=bound, dtype=jnp.float32)

    # One-time parameter fusion (module-init time, not per call).
    bias_sum = bias1 + bias2

    out = mem_planning_with_scratch_tensor(a, b, w1, w2, bias_sum)
    jax.block_until_ready(out)

    ref = reference(a, b, w1, bias1, w2, bias2)
    assert out.shape == (M, N), out.shape
    assert jnp.allclose(out, ref, atol=1e-5, rtol=1e-5), "mismatch vs reference"

    print("KERNEL_OK")
</pallas_src>

<mosaic_0001>
module attributes {stable_mosaic.version = 11 : i64} {
  func.func @_dual_linear_kernel(%arg0: i32, %arg1: memref<10x4xf32, #tpu.memory_space<vmem>>, %arg2: memref<10x4xf32, #tpu.memory_space<vmem>>, %arg3: memref<4x2xf32, #tpu.memory_space<vmem>>, %arg4: memref<4x2xf32, #tpu.memory_space<vmem>>, %arg5: memref<1x2xf32, #tpu.memory_space<vmem>>, %arg6: memref<10x2xf32, #tpu.memory_space<vmem>>) attributes {dimension_semantics = [#tpu.dimension_semantics<parallel>], iteration_bounds = array<i64: 1>, scalar_prefetch = 0 : i64, scratch_operands = 0 : i64, tpu.core_type = #tpu.core_type<tc>, window_params = [{transform_indices = @transform_0, window_bounds = array<i64: 10, 4>}, {transform_indices = @transform_1, window_bounds = array<i64: 10, 4>}, {pipeline_mode = #tpu.pipeline_mode<synchronous>, transform_indices = @transform_2, window_bounds = array<i64: 4, 2>}, {pipeline_mode = #tpu.pipeline_mode<synchronous>, transform_indices = @transform_3, window_bounds = array<i64: 4, 2>}, {pipeline_mode = #tpu.pipeline_mode<synchronous>, transform_indices = @transform_4, window_bounds = array<i64: 1, 2>}, {transform_indices = @transform_5, window_bounds = array<i64: 10, 2>}]} {
    %c0 = arith.constant 0 : index
    %c0_0 = arith.constant 0 : index
    %0 = vector.load %arg1[%c0, %c0_0] : memref<10x4xf32, #tpu.memory_space<vmem>>, vector<10x4xf32>
    %c0_1 = arith.constant 0 : index
    %c0_2 = arith.constant 0 : index
    %1 = vector.load %arg3[%c0_1, %c0_2] : memref<4x2xf32, #tpu.memory_space<vmem>>, vector<4x2xf32>
    %cst = arith.constant dense<0.000000e+00> : vector<10x2xf32>
    %2 = tpu.matmul %0, %1, %cst {dimension_numbers = #tpu.dot_dimension_numbers<[1], [0], [0], [1], [0, 0, 1, 1], [], []>, precision = #tpu.contract_precision<fp32>} : vector<10x4xf32>, vector<4x2xf32>, vector<10x2xf32> -> vector<10x2xf32>
    %c0_3 = arith.constant 0 : index
    %c0_4 = arith.constant 0 : index
    %3 = vector.load %arg2[%c0_3, %c0_4] : memref<10x4xf32, #tpu.memory_space<vmem>>, vector<10x4xf32>
    %c0_5 = arith.constant 0 : index
    %c0_6 = arith.constant 0 : index
    %4 = vector.load %arg4[%c0_5, %c0_6] : memref<4x2xf32, #tpu.memory_space<vmem>>, vector<4x2xf32>
    %cst_7 = arith.constant dense<0.000000e+00> : vector<10x2xf32>
    %5 = tpu.matmul %3, %4, %cst_7 {dimension_numbers = #tpu.dot_dimension_numbers<[1], [0], [0], [1], [0, 0, 1, 1], [], []>, precision = #tpu.contract_precision<fp32>} : vector<10x4xf32>, vector<4x2xf32>, vector<10x2xf32> -> vector<10x2xf32>
    %6 = arith.addf %2, %5 : vector<10x2xf32>
    %c0_8 = arith.constant 0 : index
    %c0_9 = arith.constant 0 : index
    %7 = vector.load %arg5[%c0_8, %c0_9] : memref<1x2xf32, #tpu.memory_space<vmem>>, vector<1x2xf32>
    %8 = vector.broadcast %7 : vector<1x2xf32> to vector<10x2xf32>
    %9 = arith.addf %6, %8 : vector<10x2xf32>
    %c0_10 = arith.constant 0 : index
    %c0_11 = arith.constant 0 : index
    %10 = vector.load %arg6[%c0_10, %c0_11] : memref<10x2xf32, #tpu.memory_space<vmem>>, vector<10x2xf32>
    tpu.vector_store %arg6[%c0_10, %c0_11], %9 {strides = array<i32>} : memref<10x2xf32, #tpu.memory_space<vmem>>, vector<10x2xf32>,
    return
  }
  func.func @transform_0(%arg0: i32) -> (i32, i32) {
    %c0_i32 = arith.constant 0 : i32
    %c0_i32_0 = arith.constant 0 : i32
    return %arg0, %c0_i32 : i32, i32
  }
  func.func @transform_1(%arg0: i32) -> (i32, i32) {
    %c0_i32 = arith.constant 0 : i32
    %c0_i32_0 = arith.constant 0 : i32
    return %arg0, %c0_i32 : i32, i32
  }
  func.func @transform_2(%arg0: i32) -> (i32, i32) {
    %c0_i32 = arith.constant 0 : i32
    %c0_i32_0 = arith.constant 0 : i32
    %c0_i32_1 = arith.constant 0 : i32
    return %c0_i32, %c0_i32_0 : i32, i32
  }
  func.func @transform_3(%arg0: i32) -> (i32, i32) {
    %c0_i32 = arith.constant 0 : i32
    %c0_i32_0 = arith.constant 0 : i32
    %c0_i32_1 = arith.constant 0 : i32
    return %c0_i32, %c0_i32_0 : i32, i32
  }
  func.func @transform_4(%arg0: i32) -> (i32, i32) {
    %c0_i32 = arith.constant 0 : i32
    %c0_i32_0 = arith.constant 0 : i32
    %c0_i32_1 = arith.constant 0 : i32
    return %c0_i32, %c0_i32_0 : i32, i32
  }
  func.func @transform_5(%arg0: i32) -> (i32, i32) {
    %c0_i32 = arith.constant 0 : i32
    %c0_i32_0 = arith.constant 0 : i32
    return %arg0, %c0_i32 : i32, i32
  }
}

</mosaic_0001>

<llo_original>
// kernel: tpu_custom_call.1
$region0: #{tpu_custom_call.1}
  #allocation0 [shape = 'u32[]', space=smem, size = 0x4, offset = 0x4, fixed_abs, tag = 'smem constant byte address 0x4 - core index']
  #allocation1 [shape = 'u32[144,128]{1,0:T(1,128)}', space=vmem, size = 0x12000, scoped, tag = 'internal scratch']
  %s0 = inlined_call_operand.vmem [shape: f32[10,4], index: 0, kind: input, shape index: {}]
  %s1 = inlined_call_operand.vmem [shape: f32[10,4], index: 1, kind: input, shape index: {}]
  %s2 = inlined_call_operand.vmem [shape: f32[4,2], index: 2, kind: input, shape index: {}]
  %s3 = inlined_call_operand.vmem [shape: f32[4,2], index: 3, kind: input, shape index: {}]
  %s4 = inlined_call_operand.vmem [shape: f32[1,2], index: 4, kind: input, shape index: {}]
  %s5 = inlined_call_operand.vmem [shape: f32[10,2], index: 5, kind: output, shape index: {}]
  %s6 = sld [smem:[#allocation0]]
  $region30: #{tpu_custom_call.1} parent=0
    _
  %s8 = ssub.s32 1, %s6
  %s9 = scalar_select 0, %s8, %s6
  // Predicated region
  $region2: #{tpu_custom_call.1} parent=0 // pred_check
    _
  $region3: #{tpu_custom_call.1} parent=0 // pred_check_branch
    %11 = sbr.rel (0) target = $region5
  $region4: #{tpu_custom_call.1} parent=0 // pred_region
    _
  $region5: #{tpu_custom_call.1} parent=0 // pred_fallthru
    _
  // Predicated region
  $region6: #{tpu_custom_call.1} parent=0 // pred_check
    _
  $region7: #{tpu_custom_call.1} parent=0 // pred_check_branch
    %13 = sbr.rel (0) target = $region9
  $region8: #{tpu_custom_call.1} parent=0 // pred_region
    _
  $region9: #{tpu_custom_call.1} parent=0 // pred_fallthru
    _
  // Predicated region
  $region10: #{tpu_custom_call.1} parent=0 // pred_check
    _
  $region11: #{tpu_custom_call.1} parent=0 // pred_check_branch
    %15 = sbr.rel (0) target = $region13
  $region12: #{tpu_custom_call.1} parent=0 // pred_region
    _
  $region13: #{tpu_custom_call.1} parent=0 // pred_fallthru
    _
  // Predicated region
  $region14: #{tpu_custom_call.1} parent=0 // pred_check
    _
  $region15: #{tpu_custom_call.1} parent=0 // pred_check_branch
    %17 = sbr.rel (0) target = $region17
  $region16: #{tpu_custom_call.1} parent=0 // pred_region
    _
  $region17: #{tpu_custom_call.1} parent=0 // pred_fallthru
    _
  // Predicated region
  $region18: #{tpu_custom_call.1} parent=0 // pred_check
    _
  $region19: #{tpu_custom_call.1} parent=0 // pred_check_branch
    %19 = sbr.rel (0) target = $region21
  $region20: #{tpu_custom_call.1} parent=0 // pred_region
    _
  $region21: #{tpu_custom_call.1} parent=0 // pred_fallthru
    _
  %v20 = vld [vmem:[%s0] sm:$0xff]
  %v21 = vld [vmem:[%s0 + $0x8] sm:$0x3]
  %v22 = vld [vmem:[%s2] sm:$0xf]
  %v23 = vld [vmem:[%s1] sm:$0xff]
  %v24 = vld [vmem:[%s1 + $0x8] sm:$0x3]
  %v25 = vld [vmem:[%s3] sm:$0xf]
  %vm26 = vcmask 31744
  %v28 = vsel %vm26, %v23, 0
  %v31 = vsel %vm26, %v24, 0
  %vm33 = vcmask 1043456
  %v35 = vsel %vm33, %v25, 0
  %37 = vmatprep.subr.mxu0 0.0
  %38 = vmatpush1.msra.mxu0 0.0
  %39 = vmatprep.subr.mxu0 0.0
  %40 = vmatpush1.msra.mxu0 0.0
  %41 = vmatprep.subr.mxu0 0.0
  %42 = vmatpush1.msra.mxu0 0.0
  %43 = vmatprep.subr.mxu0 0.0
  %44 = vmatpush1.msra.mxu0 0.0
  %45 = vmatprep.subr.mxu0 0.0
  %46 = vmatpush1.msra.mxu0 0.0
  %47 = vmatprep.subr.mxu0 0.0
  %48 = vmatpush1.msra.mxu0 0.0
  %49 = vmatprep.subr.mxu0 0.0
  %50 = vmatpush1.msra.mxu0 0.0
  %51 = vmatprep.subr.mxu0 0.0
  %52 = vmatpush1.msra.mxu0 0.0
  %53 = vmatprep.subr.mxu0 0.0
  %54 = vmatpush1.msra.mxu0 0.0
  %55 = vmatprep.subr.mxu0 0.0
  %56 = vmatpush1.msra.mxu0 0.0
  %57 = vmatprep.subr.mxu0 0.0
  %58 = vmatpush1.msra.mxu0 0.0
  %59 = vmatprep.subr.mxu0 0.0
  %60 = vmatpush1.msra.mxu0 0.0
  %61 = vmatprep.subr.mxu0 0.0
  %62 = vmatpush1.msra.mxu0 0.0
  %63 = vmatprep.subr.mxu0 0.0
  %64 = vmatpush1.msra.mxu0 0.0
  %65 = vmatprep.subr.mxu0 0.0
  %66 = vmatpush1.msra.mxu0 0.0
  %67 = vmatprep.subr.mxu0 0.0
  %v68 = vand.u32 %v35, 4294901760
  %69 = vmatpush1.msra.mxu0 %v68
  %70 = vmatprep.subr.mxu0 0.0
  %71 = vmatpush2.msra.mxu0 0.0
  %72 = vmatprep.subr.mxu0 0.0
  %73 = vmatpush2.msra.mxu0 0.0
  %74 = vmatprep.subr.mxu0 0.0
  %75 = vmatpush2.msra.mxu0 0.0
  %76 = vmatprep.subr.mxu0 0.0
  %77 = vmatpush2.msra.mxu0 0.0
  %78 = vmatprep.subr.mxu0 0.0
  %79 = vmatpush2.msra.mxu0 0.0
  %80 = vmatprep.subr.mxu0 0.0
  %81 = vmatpush2.msra.mxu0 0.0
  %82 = vmatprep.subr.mxu0 0.0
  %83 = vmatpush2.msra.mxu0 0.0
  %84 = vmatprep.subr.mxu0 0.0
  %85 = vmatpush2.msra.mxu0 0.0
  %86 = vmatprep.subr.mxu0 0.0
  %87 = vmatpush2.msra.mxu0 0.0
  %88 = vmatprep.subr.mxu0 0.0
  %89 = vmatpush2.msra.mxu0 0.0
  %90 = vmatprep.subr.mxu0 0.0
  %91 = vmatpush2.msra.mxu0 0.0
  %92 = vmatprep.subr.mxu0 0.0
  %93 = vmatpush2.msra.mxu0 0.0
  %94 = vmatprep.subr.mxu0 0.0
  %95 = vmatpush2.msra.mxu0 0.0
  %96 = vmatprep.subr.mxu0 0.0
  %97 = vmatpush2.msra.mxu0 0.0
  %98 = vmatprep.subr.mxu0 0.0
  %99 = vmatpush2.msra.mxu0 0.0
  %100 = vmatprep.subr.mxu0 0.0
  %101 = vmatpush2.msra.mxu0 0.0
  %102 = vmatprep.mubr.f32.mxu0 0.0
  %v103 = vand.u32 %v28, 4294901760
  %v104 = vsub.f32 %v28, %v103
  %v105 = vand.u32 %v104, 4294901760
  %v106 = vsub.f32 %v104, %v105
  %v107 = vand.u32 %v106, 4294901760
  %108 = vmatmul.mubr.f32.gmra.mxu0 %v107
  %v109 = vpop.f32.mrf.mxu0
  %v110 = vadd.f32 0.0, %v109
  %v111 = vpop.f32.mrf.mxu0
  %112 = vmatprep.mubr.f32.mxu0 0.0
  %v113 = vand.u32 %v31, 4294901760
  %v114 = vsub.f32 %v31, %v113
  %v115 = vand.u32 %v114, 4294901760
  %v116 = vsub.f32 %v114, %v115
  %v117 = vand.u32 %v116, 4294901760
  %118 = vmatmul.mubr.f32.gmra.mxu0 %v117
  %v119 = vpop.f32.mrf.mxu0
  %v120 = vadd.f32 0.0, %v119
  %v121 = vpop.f32.mrf.mxu0
  %122 = vdwg.mxu0
  %123 = vmatprep.subr.mxu0 0.0
  %124 = vmatpush1.msra.mxu0 0.0
  %125 = vmatprep.subr.mxu0 0.0
  %126 = vmatpush1.msra.mxu0 0.0
  %127 = vmatprep.subr.mxu0 0.0
  %128 = vmatpush1.msra.mxu0 0.0
  %129 = vmatprep.subr.mxu0 0.0
  %130 = vmatpush1.msra.mxu0 0.0
  %131 = vmatprep.subr.mxu0 0.0
  %132 = vmatpush1.msra.mxu0 0.0
  %133 = vmatprep.subr.mxu0 0.0
  %134 = vmatpush1.msra.mxu0 0.0
  %135 = vmatprep.subr.mxu0 0.0
  %136 = vmatpush1.msra.mxu0 0.0
  %137 = vmatprep.subr.mxu0 0.0
  %138 = vmatpush1.msra.mxu0 0.0
  %139 = vmatprep.subr.mxu0 0.0
  %140 = vmatpush1.msra.mxu0 0.0
  %141 = vmatprep.subr.mxu0 0.0
  %142 = vmatpush1.msra.mxu0 0.0
  %143 = vmatprep.subr.mxu0 0.0
  %144 = vmatpush1.msra.mxu0 0.0
  %145 = vmatprep.subr.mxu0 0.0
  %146 = vmatpush1.msra.mxu0 0.0
  %147 = vmatprep.subr.mxu0 0.0
  %148 = vmatpush1.msra.mxu0 0.0
  %149 = vmatprep.subr.mxu0 0.0
  %150 = vmatpush1.msra.mxu0 0.0
  %151 = vmatprep.subr.mxu0 0.0
  %152 = vmatpush1.msra.mxu0 0.0
  %153 = vmatprep.subr.mxu0 0.0
  %v154 = vand.u32 %v35, 4294901760
  %v155 = vsub.f32 %v35, %v154
  %v156 = vand.u32 %v155, 4294901760
  %v157 = vsub.f32 %v155, %v156
  %v158 = vand.u32 %v157, 4294901760
  %159 = vmatpush1.msra.mxu0 %v158
  %160 = vmatprep.subr.mxu0 0.0
  %161 = vmatpush2.msra.mxu0 0.0
  %162 = vmatprep.subr.mxu0 0.0
  %163 = vmatpush2.msra.mxu0 0.0
  %164 = vmatprep.subr.mxu0 0.0
  %165 = vmatpush2.msra.mxu0 0.0
  %166 = vmatprep.subr.mxu0 0.0
  %167 = vmatpush2.msra.mxu0 0.0
  %168 = vmatprep.subr.mxu0 0.0
  %169 = vmatpush2.msra.mxu0 0.0
  %170 = vmatprep.subr.mxu0 0.0
  %171 = vmatpush2.msra.mxu0 0.0
  %172 = vmatprep.subr.mxu0 0.0
  %173 = vmatpush2.msra.mxu0 0.0
  %174 = vmatprep.subr.mxu0 0.0
  %175 = vmatpush2.msra.mxu0 0.0
  %176 = vmatprep.subr.mxu0 0.0
  %177 = vmatpush2.msra.mxu0 0.0
  %178 = vmatprep.subr.mxu0 0.0
  %179 = vmatpush2.msra.mxu0 0.0
  %180 = vmatprep.subr.mxu0 0.0
  %181 = vmatpush2.msra.mxu0 0.0
  %182 = vmatprep.subr.mxu0 0.0
  %183 = vmatpush2.msra.mxu0 0.0
  %184 = vmatprep.subr.mxu0 0.0
  %185 = vmatpush2.msra.mxu0 0.0
  %186 = vmatprep.subr.mxu0 0.0
  %187 = vmatpush2.msra.mxu0 0.0
  %188 = vmatprep.subr.mxu0 0.0
  %189 = vmatpush2.msra.mxu0 0.0
  %190 = vmatprep.subr.mxu0 0.0
  %191 = vmatpush2.msra.mxu0 0.0
  %192 = vmatprep.mubr.f32.mxu0 0.0
  %v193 = vand.u32 %v28, 4294901760
  %194 = vmatmul.mubr.f32.gmra.mxu0 %v193
  %v195 = vpop.f32.mrf.mxu0
  %v196 = vadd.f32 %v110, %v195
  %v197 = vpop.f32.mrf.mxu0
  %198 = vmatprep.mubr.f32.mxu0 0.0
  %v199 = vand.u32 %v31, 4294901760
  %200 = vmatmul.mubr.f32.gmra.mxu0 %v199
  %v201 = vpop.f32.mrf.mxu0
  %v202 = vadd.f32 %v120, %v201
  %v203 = vpop.f32.mrf.mxu0
  %204 = vdwg.mxu0
  %205 = vmatprep.subr.mxu0 0.0
  %206 = vmatpush1.msra.mxu0 0.0
  %207 = vmatprep.subr.mxu0 0.0
  %208 = vmatpush1.msra.mxu0 0.0
  %209 = vmatprep.subr.mxu0 0.0
  %210 = vmatpush1.msra.mxu0 0.0
  %211 = vmatprep.subr.mxu0 0.0
  %212 = vmatpush1.msra.mxu0 0.0
  %213 = vmatprep.subr.mxu0 0.0
  %214 = vmatpush1.msra.mxu0 0.0
  %215 = vmatprep.subr.mxu0 0.0
  %216 = vmatpush1.msra.mxu0 0.0
  %217 = vmatprep.subr.mxu0 0.0
  %218 = vmatpush1.msra.mxu0 0.0
  %219 = vmatprep.subr.mxu0 0.0
  %220 = vmatpush1.msra.mxu0 0.0
  %221 = vmatprep.subr.mxu0 0.0
  %222 = vmatpush1.msra.mxu0 0.0
  %223 = vmatprep.subr.mxu0 0.0
  %224 = vmatpush1.msra.mxu0 0.0
  %225 = vmatprep.subr.mxu0 0.0
  %226 = vmatpush1.msra.mxu0 0.0
  %227 = vmatprep.subr.mxu0 0.0
  %228 = vmatpush1.msra.mxu0 0.0
  %229 = vmatprep.subr.mxu0 0.0
  %230 = vmatpush1.msra.mxu0 0.0
  %231 = vmatprep.subr.mxu0 0.0
  %232 = vmatpush1.msra.mxu0 0.0
  %233 = vmatprep.subr.mxu0 0.0
  %234 = vmatpush1.msra.mxu0 0.0
  %235 = vmatprep.subr.mxu0 0.0
  %v236 = vand.u32 %v35, 4294901760
  %v237 = vsub.f32 %v35, %v236
  %238 = vmatpush1.msra.mxu0 %v237
  %239 = vmatprep.subr.mxu0 0.0
  %240 = vmatpush2.msra.mxu0 0.0
  %241 = vmatprep.subr.mxu0 0.0
  %242 = vmatpush2.msra.mxu0 0.0
  %243 = vmatprep.subr.mxu0 0.0
  %244 = vmatpush2.msra.mxu0 0.0
  %245 = vmatprep.subr.mxu0 0.0
  %246 = vmatpush2.msra.mxu0 0.0
  %247 = vmatprep.subr.mxu0 0.0
  %248 = vmatpush2.msra.mxu0 0.0
  %249 = vmatprep.subr.mxu0 0.0
  %250 = vmatpush2.msra.mxu0 0.0
  %251 = vmatprep.subr.mxu0 0.0
  %252 = vmatpush2.msra.mxu0 0.0
  %253 = vmatprep.subr.mxu0 0.0
  %254 = vmatpush2.msra.mxu0 0.0
  %255 = vmatprep.subr.mxu0 0.0
  %256 = vmatpush2.msra.mxu0 0.0
  %257 = vmatprep.subr.mxu0 0.0
  %258 = vmatpush2.msra.mxu0 0.0
  %259 = vmatprep.subr.mxu0 0.0
  %260 = vmatpush2.msra.mxu0 0.0
  %261 = vmatprep.subr.mxu0 0.0
  %262 = vmatpush2.msra.mxu0 0.0
  %263 = vmatprep.subr.mxu0 0.0
  %264 = vmatpush2.msra.mxu0 0.0
  %265 = vmatprep.subr.mxu0 0.0
  %266 = vmatpush2.msra.mxu0 0.0
  %267 = vmatprep.subr.mxu0 0.0
  %268 = vmatpush2.msra.mxu0 0.0
  %269 = vmatprep.subr.mxu0 0.0
  %270 = vmatpush2.msra.mxu0 0.0
  %271 = vmatprep.mubr.f32.mxu0 0.0
  %v272 = vand.u32 %v28, 4294901760
  %v273 = vsub.f32 %v28, %v272
  %274 = vmatmul.mubr.f32.gmra.mxu0 %v273
  %v275 = vpop.f32.mrf.mxu0
  %v276 = vadd.f32 %v196, %v275
  %v277 = vpop.f32.mrf.mxu0
  %278 = vmatprep.mubr.f32.mxu0 0.0
  %v279 = vand.u32 %v31, 4294901760
  %v280 = vsub.f32 %v31, %v279
  %281 = vmatmul.mubr.f32.gmra.mxu0 %v280
  %v282 = vpop.f32.mrf.mxu0
  %v283 = vadd.f32 %v202, %v282
  %v284 = vpop.f32.mrf.mxu0
  %285 = vdwg.mxu0
  %286 = vmatprep.subr.mxu0 0.0
  %287 = vmatpush1.msra.mxu0 0.0
  %288 = vmatprep.subr.mxu0 0.0
  %289 = vmatpush1.msra.mxu0 0.0
  %290 = vmatprep.subr.mxu0 0.0
  %291 = vmatpush1.msra.mxu0 0.0
  %292 = vmatprep.subr.mxu0 0.0
  %293 = vmatpush1.msra.mxu0 0.0
  %294 = vmatprep.subr.mxu0 0.0
  %295 = vmatpush1.msra.mxu0 0.0
  %296 = vmatprep.subr.mxu0 0.0
  %297 = vmatpush1.msra.mxu0 0.0
  %298 = vmatprep.subr.mxu0 0.0
  %299 = vmatpush1.msra.mxu0 0.0
  %300 = vmatprep.subr.mxu0 0.0
  %301 = vmatpush1.msra.mxu0 0.0
  %302 = vmatprep.subr.mxu0 0.0
  %303 = vmatpush1.msra.mxu0 0.0
  %304 = vmatprep.subr.mxu0 0.0
  %305 = vmatpush1.msra.mxu0 0.0
  %306 = vmatprep.subr.mxu0 0.0
  %307 = vmatpush1.msra.mxu0 0.0
  %308 = vmatprep.subr.mxu0 0.0
  %309 = vmatpush1.msra.mxu0 0.0
  %310 = vmatprep.subr.mxu0 0.0
  %311 = vmatpush1.msra.mxu0 0.0
  %312 = vmatprep.subr.mxu0 0.0
  %313 = vmatpush1.msra.mxu0 0.0
  %314 = vmatprep.subr.mxu0 0.0
  %315 = vmatpush1.msra.mxu0 0.0
  %316 = vmatprep.subr.mxu0 0.0
  %v317 = vand.u32 %v35, 4294901760
  %318 = vmatpush1.msra.mxu0 %v317
  %319 = vmatprep.subr.mxu0 0.0
  %320 = vmatpush2.msra.mxu0 0.0
  %321 = vmatprep.subr.mxu0 0.0
  %322 = vmatpush2.msra.mxu0 0.0
  %323 = vmatprep.subr.mxu0 0.0
  %324 = vmatpush2.msra.mxu0 0.0
  %325 = vmatprep.subr.mxu0 0.0
  %326 = vmatpush2.msra.mxu0 0.0
  %327 = vmatprep.subr.mxu0 0.0
  %328 = vmatpush2.msra.mxu0 0.0
  %329 = vmatprep.subr.mxu0 0.0
  %330 = vmatpush2.msra.mxu0 0.0
  %331 = vmatprep.subr.mxu0 0.0
  %332 = vmatpush2.msra.mxu0 0.0
  %333 = vmatprep.subr.mxu0 0.0
  %334 = vmatpush2.msra.mxu0 0.0
  %335 = vmatprep.subr.mxu0 0.0
  %336 = vmatpush2.msra.mxu0 0.0
  %337 = vmatprep.subr.mxu0 0.0
  %338 = vmatpush2.msra.mxu0 0.0
  %339 = vmatprep.subr.mxu0 0.0
  %340 = vmatpush2.msra.mxu0 0.0
  %341 = vmatprep.subr.mxu0 0.0
  %342 = vmatpush2.msra.mxu0 0.0
  %343 = vmatprep.subr.mxu0 0.0
  %344 = vmatpush2.msra.mxu0 0.0
  %345 = vmatprep.subr.mxu0 0.0
  %346 = vmatpush2.msra.mxu0 0.0
  %347 = vmatprep.subr.mxu0 0.0
  %348 = vmatpush2.msra.mxu0 0.0
  %349 = vmatprep.subr.mxu0 0.0
  %350 = vmatpush2.msra.mxu0 0.0
  %351 = vmatprep.mubr.f32.mxu0 0.0
  %v352 = vand.u32 %v28, 4294901760
  %v353 = vsub.f32 %v28, %v352
  %v354 = vand.u32 %v353, 4294901760
  %355 = vmatmul.mubr.f32.gmra.mxu0 %v354
  %v356 = vpop.f32.mrf.mxu0
  %v357 = vadd.f32 %v276, %v356
  %v358 = vpop.f32.mrf.mxu0
  %359 = vmatprep.mubr.f32.mxu0 0.0
  %v360 = vand.u32 %v31, 4294901760
  %v361 = vsub.f32 %v31, %v360
  %v362 = vand.u32 %v361, 4294901760
  %363 = vmatmul.mubr.f32.gmra.mxu0 %v362
  %v364 = vpop.f32.mrf.mxu0
  %v365 = vadd.f32 %v283, %v364
  %v366 = vpop.f32.mrf.mxu0
  %367 = vdwg.mxu0
  %368 = vmatprep.subr.mxu0 0.0
  %369 = vmatpush1.msra.mxu0 0.0
  %370 = vmatprep.subr.mxu0 0.0
  %371 = vmatpush1.msra.mxu0 0.0
  %372 = vmatprep.subr.mxu0 0.0
  %373 = vmatpush1.msra.mxu0 0.0
  %374 = vmatprep.subr.mxu0 0.0
  %375 = vmatpush1.msra.mxu0 0.0
  %376 = vmatprep.subr.mxu0 0.0
  %377 = vmatpush1.msra.mxu0 0.0
  %378 = vmatprep.subr.mxu0 0.0
  %379 = vmatpush1.msra.mxu0 0.0
  %380 = vmatprep.subr.mxu0 0.0
  %381 = vmatpush1.msra.mxu0 0.0
  %382 = vmatprep.subr.mxu0 0.0
  %383 = vmatpush1.msra.mxu0 0.0
  %384 = vmatprep.subr.mxu0 0.0
  %385 = vmatpush1.msra.mxu0 0.0
  %386 = vmatprep.subr.mxu0 0.0
  %387 = vmatpush1.msra.mxu0 0.0
  %388 = vmatprep.subr.mxu0 0.0
  %389 = vmatpush1.msra.mxu0 0.0
  %390 = vmatprep.subr.mxu0 0.0
  %391 = vmatpush1.msra.mxu0 0.0
  %392 = vmatprep.subr.mxu0 0.0
  %393 = vmatpush1.msra.mxu0 0.0
  %394 = vmatprep.subr.mxu0 0.0
  %395 = vmatpush1.msra.mxu0 0.0
  %396 = vmatprep.subr.mxu0 0.0
  %397 = vmatpush1.msra.mxu0 0.0
  %398 = vmatprep.subr.mxu0 0.0
  %v399 = vand.u32 %v35, 4294901760
  %v400 = vsub.f32 %v35, %v399
  %v401 = vand.u32 %v400, 4294901760
  %402 = vmatpush1.msra.mxu0 %v401
  %403 = vmatprep.subr.mxu0 0.0
  %404 = vmatpush2.msra.mxu0 0.0
  %405 = vmatprep.subr.mxu0 0.0
  %406 = vmatpush2.msra.mxu0 0.0
  %407 = vmatprep.subr.mxu0 0.0
  %408 = vmatpush2.msra.mxu0 0.0
  %409 = vmatprep.subr.mxu0 0.0
  %410 = vmatpush2.msra.mxu0 0.0
  %411 = vmatprep.subr.mxu0 0.0
  %412 = vmatpush2.msra.mxu0 0.0
  %413 = vmatprep.subr.mxu0 0.0
  %414 = vmatpush2.msra.mxu0 0.0
  %415 = vmatprep.subr.mxu0 0.0
  %416 = vmatpush2.msra.mxu0 0.0
  %417 = vmatprep.subr.mxu0 0.0
  %418 = vmatpush2.msra.mxu0 0.0
  %419 = vmatprep.subr.mxu0 0.0
  %420 = vmatpush2.msra.mxu0 0.0
  %421 = vmatprep.subr.mxu0 0.0
  %422 = vmatpush2.msra.mxu0 0.0
  %423 = vmatprep.subr.mxu0 0.0
  %424 = vmatpush2.msra.mxu0 0.0
  %425 = vmatprep.subr.mxu0 0.0
  %426 = vmatpush2.msra.mxu0 0.0
  %427 = vmatprep.subr.mxu0 0.0
  %428 = vmatpush2.msra.mxu0 0.0
  %429 = vmatprep.subr.mxu0 0.0
  %430 = vmatpush2.msra.mxu0 0.0
  %431 = vmatprep.subr.mxu0 0.0
  %432 = vmatpush2.msra.mxu0 0.0
  %433 = vmatprep.subr.mxu0 0.0
  %434 = vmatpush2.msra.mxu0 0.0
  %435 = vmatprep.mubr.f32.mxu0 0.0
  %v436 = vand.u32 %v28, 4294901760
  %437 = vmatmul.mubr.f32.gmra.mxu0 %v436
  %v438 = vpop.f32.mrf.mxu0
  %v439 = vadd.f32 %v357, %v438
  %v440 = vpop.f32.mrf.mxu0
  %441 = vmatprep.mubr.f32.mxu0 0.0
  %v442 = vand.u32 %v31, 4294901760
  %443 = vmatmul.mubr.f32.gmra.mxu0 %v442
  %v444 = vpop.f32.mrf.mxu0
  %v445 = vadd.f32 %v365, %v444
  %v446 = vpop.f32.mrf.mxu0
  %447 = vdwg.mxu0
  %448 = vmatprep.subr.mxu0 0.0
  %449 = vmatpush1.msra.mxu0 0.0
  %450 = vmatprep.subr.mxu0 0.0
  %451 = vmatpush1.msra.mxu0 0.0
  %452 = vmatprep.subr.mxu0 0.0
  %453 = vmatpush1.msra.mxu0 0.0
  %454 = vmatprep.subr.mxu0 0.0
  %455 = vmatpush1.msra.mxu0 0.0
  %456 = vmatprep.subr.mxu0 0.0
  %457 = vmatpush1.msra.mxu0 0.0
  %458 = vmatprep.subr.mxu0 0.0
  %459 = vmatpush1.msra.mxu0 0.0
  %460 = vmatprep.subr.mxu0 0.0
  %461 = vmatpush1.msra.mxu0 0.0
  %462 = vmatprep.subr.mxu0 0.0
  %463 = vmatpush1.msra.mxu0 0.0
  %464 = vmatprep.subr.mxu0 0.0
  %465 = vmatpush1.msra.mxu0 0.0
  %466 = vmatprep.subr.mxu0 0.0
  %467 = vmatpush1.msra.mxu0 0.0
  %468 = vmatprep.subr.mxu0 0.0
  %469 = vmatpush1.msra.mxu0 0.0
  %470 = vmatprep.subr.mxu0 0.0
  %471 = vmatpush1.msra.mxu0 0.0
  %472 = vmatprep.subr.mxu0 0.0
  %473 = vmatpush1.msra.mxu0 0.0
  %474 = vmatprep.subr.mxu0 0.0
  %475 = vmatpush1.msra.mxu0 0.0
  %476 = vmatprep.subr.mxu0 0.0
  %477 = vmatpush1.msra.mxu0 0.0
  %478 = vmatprep.subr.mxu0 0.0
  %v479 = vand.u32 %v35, 4294901760
  %480 = vmatpush1.msra.mxu0 %v479
  %481 = vmatprep.subr.mxu0 0.0
  %482 = vmatpush2.msra.mxu0 0.0
  %483 = vmatprep.subr.mxu0 0.0
  %484 = vmatpush2.msra.mxu0 0.0
  %485 = vmatprep.subr.mxu0 0.0
  %486 = vmatpush2.msra.mxu0 0.0
  %487 = vmatprep.subr.mxu0 0.0
  %488 = vmatpush2.msra.mxu0 0.0
  %489 = vmatprep.subr.mxu0 0.0
  %490 = vmatpush2.msra.mxu0 0.0
  %491 = vmatprep.subr.mxu0 0.0
  %492 = vmatpush2.msra.mxu0 0.0
  %493 = vmatprep.subr.mxu0 0.0
  %494 = vmatpush2.msra.mxu0 0.0
  %495 = vmatprep.subr.mxu0 0.0
  %496 = vmatpush2.msra.mxu0 0.0
  %497 = vmatprep.subr.mxu0 0.0
  %498 = vmatpush2.msra.mxu0 0.0
  %499 = vmatprep.subr.mxu0 0.0
  %500 = vmatpush2.msra.mxu0 0.0
  %501 = vmatprep.subr.mxu0 0.0
  %502 = vmatpush2.msra.mxu0 0.0
  %503 = vmatprep.subr.mxu0 0.0
  %504 = vmatpush2.msra.mxu0 0.0
  %505 = vmatprep.subr.mxu0 0.0
  %506 = vmatpush2.msra.mxu0 0.0
  %507 = vmatprep.subr.mxu0 0.0
  %508 = vmatpush2.msra.mxu0 0.0
  %509 = vmatprep.subr.mxu0 0.0
  %510 = vmatpush2.msra.mxu0 0.0
  %511 = vmatprep.subr.mxu0 0.0
  %512 = vmatpush2.msra.mxu0 0.0
  %513 = vmatprep.mubr.f32.mxu0 0.0
  %v514 = vand.u32 %v28, 4294901760
  %515 = vmatmul.mubr.f32.gmra.mxu0 %v514
  %v516 = vpop.f32.mrf.mxu0
  %v517 = vadd.f32 %v439, %v516
  %v518 = vpop.f32.mrf.mxu0
  %519 = vmatprep.mubr.f32.mxu0 0.0
  %v520 = vand.u32 %v31, 4294901760
  %521 = vmatmul.mubr.f32.gmra.mxu0 %v520
  %v522 = vpop.f32.mrf.mxu0
  %v523 = vadd.f32 %v445, %v522
  %v524 = vpop.f32.mrf.mxu0
  %525 = vdwg.mxu0
  %v527 = vsel %vm26, %v20, 0
  %v530 = vsel %vm26, %v21, 0
  %v533 = vsel %vm33, %v22, 0
  %535 = vmatprep.subr.mxu0 0.0
  %536 = vmatpush1.msra.mxu0 0.0
  %537 = vmatprep.subr.mxu0 0.0
  %538 = vmatpush1.msra.mxu0 0.0
  %539 = vmatprep.subr.mxu0 0.0
  %540 = vmatpush1.msra.mxu0 0.0
  %541 = vmatprep.subr.mxu0 0.0
  %542 = vmatpush1.msra.mxu0 0.0
  %543 = vmatprep.subr.mxu0 0.0
  %544 = vmatpush1.msra.mxu0 0.0
  %545 = vmatprep.subr.mxu0 0.0
  %546 = vmatpush1.msra.mxu0 0.0
  %547 = vmatprep.subr.mxu0 0.0
  %548 = vmatpush1.msra.mxu0 0.0
  %549 = vmatprep.subr.mxu0 0.0
  %550 = vmatpush1.msra.mxu0 0.0
  %551 = vmatprep.subr.mxu0 0.0
  %552 = vmatpush1.msra.mxu0 0.0
  %553 = vmatprep.subr.mxu0 0.0
  %554 = vmatpush1.msra.mxu0 0.0
  %555 = vmatprep.subr.mxu0 0.0
  %556 = vmatpush1.msra.mxu0 0.0
  %557 = vmatprep.subr.mxu0 0.0
  %558 = vmatpush1.msra.mxu0 0.0
  %559 = vmatprep.subr.mxu0 0.0
  %560 = vmatpush1.msra.mxu0 0.0
  %561 = vmatprep.subr.mxu0 0.0
  %562 = vmatpush1.msra.mxu0 0.0
  %563 = vmatprep.subr.mxu0 0.0
  %564 = vmatpush1.msra.mxu0 0.0
  %565 = vmatprep.subr.mxu0 0.0
  %v566 = vand.u32 %v533, 4294901760
  %567 = vmatpush1.msra.mxu0 %v566
  %568 = vmatprep.subr.mxu0 0.0
  %569 = vmatpush2.msra.mxu0 0.0
  %570 = vmatprep.subr.mxu0 0.0
  %571 = vmatpush2.msra.mxu0 0.0
  %572 = vmatprep.subr.mxu0 0.0
  %573 = vmatpush2.msra.mxu0 0.0
  %574 = vmatprep.subr.mxu0 0.0
  %575 = vmatpush2.msra.mxu0 0.0
  %576 = vmatprep.subr.mxu0 0.0
  %577 = vmatpush2.msra.mxu0 0.0
  %578 = vmatprep.subr.mxu0 0.0
  %579 = vmatpush2.msra.mxu0 0.0
  %580 = vmatprep.subr.mxu0 0.0
  %581 = vmatpush2.msra.mxu0 0.0
  %582 = vmatprep.subr.mxu0 0.0
  %583 = vmatpush2.msra.mxu0 0.0
  %584 = vmatprep.subr.mxu0 0.0
  %585 = vmatpush2.msra.mxu0 0.0
  %586 = vmatprep.subr.mxu0 0.0
  %587 = vmatpush2.msra.mxu0 0.0
  %588 = vmatprep.subr.mxu0 0.0
  %589 = vmatpush2.msra.mxu0 0.0
  %590 = vmatprep.subr.mxu0 0.0
  %591 = vmatpush2.msra.mxu0 0.0
  %592 = vmatprep.subr.mxu0 0.0
  %593 = vmatpush2.msra.mxu0 0.0
  %594 = vmatprep.subr.mxu0 0.0
  %595 = vmatpush2.msra.mxu0 0.0
  %596 = vmatprep.subr.mxu0 0.0
  %597 = vmatpush2.msra.mxu0 0.0
  %598 = vmatprep.subr.mxu0 0.0
  %599 = vmatpush2.msra.mxu0 0.0
  %600 = vmatprep.mubr.f32.mxu0 0.0
  %v601 = vand.u32 %v527, 4294901760
  %v602 = vsub.f32 %v527, %v601
  %v603 = vand.u32 %v602, 4294901760
  %v604 = vsub.f32 %v602, %v603
  %v605 = vand.u32 %v604, 4294901760
  %606 = vmatmul.mubr.f32.gmra.mxu0 %v605
  %v607 = vpop.f32.mrf.mxu0
  %v608 = vadd.f32 %v517, %v607
  %v609 = vpop.f32.mrf.mxu0
  %610 = vmatprep.mubr.f32.mxu0 0.0
  %v611 = vand.u32 %v530, 4294901760
  %v612 = vsub.f32 %v530, %v611
  %v613 = vand.u32 %v612, 4294901760
  %v614 = vsub.f32 %v612, %v613
  %v615 = vand.u32 %v614, 4294901760
  %616 = vmatmul.mubr.f32.gmra.mxu0 %v615
  %v617 = vpop.f32.mrf.mxu0
  %v618 = vadd.f32 %v523, %v617
  %v619 = vpop.f32.mrf.mxu0
  %620 = vdwg.mxu0
  %621 = vmatprep.subr.mxu0 0.0
  %622 = vmatpush1.msra.mxu0 0.0
  %623 = vmatprep.subr.mxu0 0.0
  %624 = vmatpush1.msra.mxu0 0.0
  %625 = vmatprep.subr.mxu0 0.0
  %626 = vmatpush1.msra.mxu0 0.0
  %627 = vmatprep.subr.mxu0 0.0
  %628 = vmatpush1.msra.mxu0 0.0
  %629 = vmatprep.subr.mxu0 0.0
  %630 = vmatpush1.msra.mxu0 0.0
  %631 = vmatprep.subr.mxu0 0.0
  %632 = vmatpush1.msra.mxu0 0.0
  %633 = vmatprep.subr.mxu0 0.0
  %634 = vmatpush1.msra.mxu0 0.0
  %635 = vmatprep.subr.mxu0 0.0
  %636 = vmatpush1.msra.mxu0 0.0
  %637 = vmatprep.subr.mxu0 0.0
  %638 = vmatpush1.msra.mxu0 0.0
  %639 = vmatprep.subr.mxu0 0.0
  %640 = vmatpush1.msra.mxu0 0.0
  %641 = vmatprep.subr.mxu0 0.0
  %642 = vmatpush1.msra.mxu0 0.0
  %643 = vmatprep.subr.mxu0 0.0
  %644 = vmatpush1.msra.mxu0 0.0
  %645 = vmatprep.subr.mxu0 0.0
  %646 = vmatpush1.msra.mxu0 0.0
  %647 = vmatprep.subr.mxu0 0.0
  %648 = vmatpush1.msra.mxu0 0.0
  %649 = vmatprep.subr.mxu0 0.0
  %650 = vmatpush1.msra.mxu0 0.0
  %651 = vmatprep.subr.mxu0 0.0
  %v652 = vand.u32 %v533, 4294901760
  %v653 = vsub.f32 %v533, %v652
  %v654 = vand.u32 %v653, 4294901760
  %v655 = vsub.f32 %v653, %v654
  %v656 = vand.u32 %v655, 4294901760
  %657 = vmatpush1.msra.mxu0 %v656
  %658 = vmatprep.subr.mxu0 0.0
  %659 = vmatpush2.msra.mxu0 0.0
  %660 = vmatprep.subr.mxu0 0.0
  %661 = vmatpush2.msra.mxu0 0.0
  %662 = vmatprep.subr.mxu0 0.0
  %663 = vmatpush2.msra.mxu0 0.0
  %664 = vmatprep.subr.mxu0 0.0
  %665 = vmatpush2.msra.mxu0 0.0
  %666 = vmatprep.subr.mxu0 0.0
  %667 = vmatpush2.msra.mxu0 0.0
  %668 = vmatprep.subr.mxu0 0.0
  %669 = vmatpush2.msra.mxu0 0.0
  %670 = vmatprep.subr.mxu0 0.0
  %671 = vmatpush2.msra.mxu0 0.0
  %672 = vmatprep.subr.mxu0 0.0
  %673 = vmatpush2.msra.mxu0 0.0
  %674 = vmatprep.subr.mxu0 0.0
  %675 = vmatpush2.msra.mxu0 0.0
  %676 = vmatprep.subr.mxu0 0.0
  %677 = vmatpush2.msra.mxu0 0.0
  %678 = vmatprep.subr.mxu0 0.0
  %679 = vmatpush2.msra.mxu0 0.0
  %680 = vmatprep.subr.mxu0 0.0
  %681 = vmatpush2.msra.mxu0 0.0
  %682 = vmatprep.subr.mxu0 0.0
  %683 = vmatpush2.msra.mxu0 0.0
  %684 = vmatprep.subr.mxu0 0.0
  %685 = vmatpush2.msra.mxu0 0.0
  %686 = vmatprep.subr.mxu0 0.0
  %687 = vmatpush2.msra.mxu0 0.0
  %688 = vmatprep.subr.mxu0 0.0
  %689 = vmatpush2.msra.mxu0 0.0
  %690 = vmatprep.mubr.f32.mxu0 0.0
  %v691 = vand.u32 %v527, 4294901760
  %692 = vmatmul.mubr.f32.gmra.mxu0 %v691
  %v693 = vpop.f32.mrf.mxu0
  %v694 = vadd.f32 %v608, %v693
  %v695 = vpop.f32.mrf.mxu0
  %696 = vmatprep.mubr.f32.mxu0 0.0
  %v697 = vand.u32 %v530, 4294901760
  %698 = vmatmul.mubr.f32.gmra.mxu0 %v697
  %v699 = vpop.f32.mrf.mxu0
  %v700 = vadd.f32 %v618, %v699
  %v701 = vpop.f32.mrf.mxu0
  %702 = vdwg.mxu0
  %703 = vmatprep.subr.mxu0 0.0
  %704 = vmatpush1.msra.mxu0 0.0
  %705 = vmatprep.subr.mxu0 0.0
  %706 = vmatpush1.msra.mxu0 0.0
  %707 = vmatprep.subr.mxu0 0.0
  %708 = vmatpush1.msra.mxu0 0.0
  %709 = vmatprep.subr.mxu0 0.0
  %710 = vmatpush1.msra.mxu0 0.0
  %711 = vmatprep.subr.mxu0 0.0
  %712 = vmatpush1.msra.mxu0 0.0
  %713 = vmatprep.subr.mxu0 0.0
  %714 = vmatpush1.msra.mxu0 0.0
  %715 = vmatprep.subr.mxu0 0.0
  %716 = vmatpush1.msra.mxu0 0.0
  %717 = vmatprep.subr.mxu0 0.0
  %718 = vmatpush1.msra.mxu0 0.0
  %719 = vmatprep.subr.mxu0 0.0
  %720 = vmatpush1.msra.mxu0 0.0
  %721 = vmatprep.subr.mxu0 0.0
  %722 = vmatpush1.msra.mxu0 0.0
  %723 = vmatprep.subr.mxu0 0.0
  %724 = vmatpush1.msra.mxu0 0.0
  %725 = vmatprep.subr.mxu0 0.0
  %726 = vmatpush1.msra.mxu0 0.0
  %727 = vmatprep.subr.mxu0 0.0
  %728 = vmatpush1.msra.mxu0 0.0
  %729 = vmatprep.subr.mxu0 0.0
  %730 = vmatpush1.msra.mxu0 0.0
  %731 = vmatprep.subr.mxu0 0.0
  %732 = vmatpush1.msra.mxu0 0.0
  %733 = vmatprep.subr.mxu0 0.0
  %v734 = vand.u32 %v533, 4294901760
  %v735 = vsub.f32 %v533, %v734
  %736 = vmatpush1.msra.mxu0 %v735
  %737 = vmatprep.subr.mxu0 0.0
  %738 = vmatpush2.msra.mxu0 0.0
  %739 = vmatprep.subr.mxu0 0.0
  %740 = vmatpush2.msra.mxu0 0.0
  %741 = vmatprep.subr.mxu0 0.0
  %742 = vmatpush2.msra.mxu0 0.0
  %743 = vmatprep.subr.mxu0 0.0
  %744 = vmatpush2.msra.mxu0 0.0
  %745 = vmatprep.subr.mxu0 0.0
  %746 = vmatpush2.msra.mxu0 0.0
  %747 = vmatprep.subr.mxu0 0.0
  %748 = vmatpush2.msra.mxu0 0.0
  %749 = vmatprep.subr.mxu0 0.0
  %750 = vmatpush2.msra.mxu0 0.0
  %751 = vmatprep.subr.mxu0 0.0
  %752 = vmatpush2.msra.mxu0 0.0
  %753 = vmatprep.subr.mxu0 0.0
  %754 = vmatpush2.msra.mxu0 0.0
  %755 = vmatprep.subr.mxu0 0.0
  %756 = vmatpush2.msra.mxu0 0.0
  %757 = vmatprep.subr.mxu0 0.0
  %758 = vmatpush2.msra.mxu0 0.0
  %759 = vmatprep.subr.mxu0 0.0
  %760 = vmatpush2.msra.mxu0 0.0
  %761 = vmatprep.subr.mxu0 0.0
  %762 = vmatpush2.msra.mxu0 0.0
  %763 = vmatprep.subr.mxu0 0.0
  %764 = vmatpush2.msra.mxu0 0.0
  %765 = vmatprep.subr.mxu0 0.0
  %766 = vmatpush2.msra.mxu0 0.0
  %767 = vmatprep.subr.mxu0 0.0
  %768 = vmatpush2.msra.mxu0 0.0
  %769 = vmatprep.mubr.f32.mxu0 0.0
  %v770 = vand.u32 %v527, 4294901760
  %v771 = vsub.f32 %v527, %v770
  %772 = vmatmul.mubr.f32.gmra.mxu0 %v771
  %v773 = vpop.f32.mrf.mxu0
  %v774 = vadd.f32 %v694, %v773
  %v775 = vpop.f32.mrf.mxu0
  %776 = vmatprep.mubr.f32.mxu0 0.0
  %v777 = vand.u32 %v530, 4294901760
  %v778 = vsub.f32 %v530, %v777
  %779 = vmatmul.mubr.f32.gmra.mxu0 %v778
  %v780 = vpop.f32.mrf.mxu0
  %v781 = vadd.f32 %v700, %v780
  %v782 = vpop.f32.mrf.mxu0
  %783 = vdwg.mxu0
  %784 = vmatprep.subr.mxu0 0.0
  %785 = vmatpush1.msra.mxu0 0.0
  %786 = vmatprep.subr.mxu0 0.0
  %787 = vmatpush1.msra.mxu0 0.0
  %788 = vmatprep.subr.mxu0 0.0
  %789 = vmatpush1.msra.mxu0 0.0
  %790 = vmatprep.subr.mxu0 0.0
  %791 = vmatpush1.msra.mxu0 0.0
  %792 = vmatprep.subr.mxu0 0.0
  %793 = vmatpush1.msra.mxu0 0.0
  %794 = vmatprep.subr.mxu0 0.0
  %795 = vmatpush1.msra.mxu0 0.0
  %796 = vmatprep.subr.mxu0 0.0
  %797 = vmatpush1.msra.mxu0 0.0
  %798 = vmatprep.subr.mxu0 0.0
  %799 = vmatpush1.msra.mxu0 0.0
  %800 = vmatprep.subr.mxu0 0.0
  %801 = vmatpush1.msra.mxu0 0.0
  %802 = vmatprep.subr.mxu0 0.0
  %803 = vmatpush1.msra.mxu0 0.0
  %804 = vmatprep.subr.mxu0 0.0
  %805 = vmatpush1.msra.mxu0 0.0
  %806 = vmatprep.subr.mxu0 0.0
  %807 = vmatpush1.msra.mxu0 0.0
  %808 = vmatprep.subr.mxu0 0.0
  %809 = vmatpush1.msra.mxu0 0.0
  %810 = vmatprep.subr.mxu0 0.0
  %811 = vmatpush1.msra.mxu0 0.0
  %812 = vmatprep.subr.mxu0 0.0
  %813 = vmatpush1.msra.mxu0 0.0
  %814 = vmatprep.subr.mxu0 0.0
  %v815 = vand.u32 %v533, 4294901760
  %816 = vmatpush1.msra.mxu0 %v815
  %817 = vmatprep.subr.mxu0 0.0
  %818 = vmatpush2.msra.mxu0 0.0
  %819 = vmatprep.subr.mxu0 0.0
  %820 = vmatpush2.msra.mxu0 0.0
  %821 = vmatprep.subr.mxu0 0.0
  %822 = vmatpush2.msra.mxu0 0.0
  %823 = vmatprep.subr.mxu0 0.0
  %824 = vmatpush2.msra.mxu0 0.0
  %825 = vmatprep.subr.mxu0 0.0
  %826 = vmatpush2.msra.mxu0 0.0
  %827 = vmatprep.subr.mxu0 0.0
  %828 = vmatpush2.msra.mxu0 0.0
  %829 = vmatprep.subr.mxu0 0.0
  %830 = vmatpush2.msra.mxu0 0.0
  %831 = vmatprep.subr.mxu0 0.0
  %832 = vmatpush2.msra.mxu0 0.0
  %833 = vmatprep.subr.mxu0 0.0
  %834 = vmatpush2.msra.mxu0 0.0
  %835 = vmatprep.subr.mxu0 0.0
  %836 = vmatpush2.msra.mxu0 0.0
  %837 = vmatprep.subr.mxu0 0.0
  %838 = vmatpush2.msra.mxu0 0.0
  %839 = vmatprep.subr.mxu0 0.0
  %840 = vmatpush2.msra.mxu0 0.0
  %841 = vmatprep.subr.mxu0 0.0
  %842 = vmatpush2.msra.mxu0 0.0
  %843 = vmatprep.subr.mxu0 0.0
  %844 = vmatpush2.msra.mxu0 0.0
  %845 = vmatprep.subr.mxu0 0.0
  %846 = vmatpush2.msra.mxu0 0.0
  %847 = vmatprep.subr.mxu0 0.0
  %848 = vmatpush2.msra.mxu0 0.0
  %849 = vmatprep.mubr.f32.mxu0 0.0
  %v850 = vand.u32 %v527, 4294901760
  %v851 = vsub.f32 %v527, %v850
  %v852 = vand.u32 %v851, 4294901760
  %853 = vmatmul.mubr.f32.gmra.mxu0 %v852
  %v854 = vpop.f32.mrf.mxu0
  %v855 = vadd.f32 %v774, %v854
  %v856 = vpop.f32.mrf.mxu0
  %857 = vmatprep.mubr.f32.mxu0 0.0
  %v858 = vand.u32 %v530, 4294901760
  %v859 = vsub.f32 %v530, %v858
  %v860 = vand.u32 %v859, 4294901760
  %861 = vmatmul.mubr.f32.gmra.mxu0 %v860
  %v862 = vpop.f32.mrf.mxu0
  %v863 = vadd.f32 %v781, %v862
  %v864 = vpop.f32.mrf.mxu0
  %865 = vdwg.mxu0
  %866 = vmatprep.subr.mxu0 0.0
  %867 = vmatpush1.msra.mxu0 0.0
  %868 = vmatprep.subr.mxu0 0.0
  %869 = vmatpush1.msra.mxu0 0.0
  %870 = vmatprep.subr.mxu0 0.0
  %871 = vmatpush1.msra.mxu0 0.0
  %872 = vmatprep.subr.mxu0 0.0
  %873 = vmatpush1.msra.mxu0 0.0
  %874 = vmatprep.subr.mxu0 0.0
  %875 = vmatpush1.msra.mxu0 0.0
  %876 = vmatprep.subr.mxu0 0.0
  %877 = vmatpush1.msra.mxu0 0.0
  %878 = vmatprep.subr.mxu0 0.0
  %879 = vmatpush1.msra.mxu0 0.0
  %880 = vmatprep.subr.mxu0 0.0
  %881 = vmatpush1.msra.mxu0 0.0
  %882 = vmatprep.subr.mxu0 0.0
  %883 = vmatpush1.msra.mxu0 0.0
  %884 = vmatprep.subr.mxu0 0.0
  %885 = vmatpush1.msra.mxu0 0.0
  %886 = vmatprep.subr.mxu0 0.0
  %887 = vmatpush1.msra.mxu0 0.0
  %888 = vmatprep.subr.mxu0 0.0
  %889 = vmatpush1.msra.mxu0 0.0
  %890 = vmatprep.subr.mxu0 0.0
  %891 = vmatpush1.msra.mxu0 0.0
  %892 = vmatprep.subr.mxu0 0.0
  %893 = vmatpush1.msra.mxu0 0.0
  %894 = vmatprep.subr.mxu0 0.0
  %895 = vmatpush1.msra.mxu0 0.0
  %896 = vmatprep.subr.mxu0 0.0
  %v897 = vand.u32 %v533, 4294901760
  %v898 = vsub.f32 %v533, %v897
  %v899 = vand.u32 %v898, 4294901760
  %900 = vmatpush1.msra.mxu0 %v899
  %901 = vmatprep.subr.mxu0 0.0
  %902 = vmatpush2.msra.mxu0 0.0
  %903 = vmatprep.subr.mxu0 0.0
  %904 = vmatpush2.msra.mxu0 0.0
  %905 = vmatprep.subr.mxu0 0.0
  %906 = vmatpush2.msra.mxu0 0.0
  %907 = vmatprep.subr.mxu0 0.0
  %908 = vmatpush2.msra.mxu0 0.0
  %909 = vmatprep.subr.mxu0 0.0
  %910 = vmatpush2.msra.mxu0 0.0
  %911 = vmatprep.subr.mxu0 0.0
  %912 = vmatpush2.msra.mxu0 0.0
  %913 = vmatprep.subr.mxu0 0.0
  %914 = vmatpush2.msra.mxu0 0.0
  %915 = vmatprep.subr.mxu0 0.0
  %916 = vmatpush2.msra.mxu0 0.0
  %917 = vmatprep.subr.mxu0 0.0
  %918 = vmatpush2.msra.mxu0 0.0
  %919 = vmatprep.subr.mxu0 0.0
  %920 = vmatpush2.msra.mxu0 0.0
  %921 = vmatprep.subr.mxu0 0.0
  %922 = vmatpush2.msra.mxu0 0.0
  %923 = vmatprep.subr.mxu0 0.0
  %924 = vmatpush2.msra.mxu0 0.0
  %925 = vmatprep.subr.mxu0 0.0
  %926 = vmatpush2.msra.mxu0 0.0
  %927 = vmatprep.subr.mxu0 0.0
  %928 = vmatpush2.msra.mxu0 0.0
  %929 = vmatprep.subr.mxu0 0.0
  %930 = vmatpush2.msra.mxu0 0.0
  %931 = vmatprep.subr.mxu0 0.0
  %932 = vmatpush2.msra.mxu0 0.0
  %933 = vmatprep.mubr.f32.mxu0 0.0
  %v934 = vand.u32 %v527, 4294901760
  %935 = vmatmul.mubr.f32.gmra.mxu0 %v934
  %v936 = vpop.f32.mrf.mxu0
  %v937 = vadd.f32 %v855, %v936
  %v938 = vpop.f32.mrf.mxu0
  %939 = vmatprep.mubr.f32.mxu0 0.0
  %v940 = vand.u32 %v530, 4294901760
  %941 = vmatmul.mubr.f32.gmra.mxu0 %v940
  %v942 = vpop.f32.mrf.mxu0
  %v943 = vadd.f32 %v863, %v942
  %v944 = vpop.f32.mrf.mxu0
  %945 = vdwg.mxu0
  %946 = vmatprep.subr.mxu0 0.0
  %947 = vmatpush1.msra.mxu0 0.0
  %948 = vmatprep.subr.mxu0 0.0
  %949 = vmatpush1.msra.mxu0 0.0
  %950 = vmatprep.subr.mxu0 0.0
  %951 = vmatpush1.msra.mxu0 0.0
  %952 = vmatprep.subr.mxu0 0.0
  %953 = vmatpush1.msra.mxu0 0.0
  %954 = vmatprep.subr.mxu0 0.0
  %955 = vmatpush1.msra.mxu0 0.0
  %956 = vmatprep.subr.mxu0 0.0
  %957 = vmatpush1.msra.mxu0 0.0
  %958 = vmatprep.subr.mxu0 0.0
  %959 = vmatpush1.msra.mxu0 0.0
  %960 = vmatprep.subr.mxu0 0.0
  %961 = vmatpush1.msra.mxu0 0.0
  %962 = vmatprep.subr.mxu0 0.0
  %963 = vmatpush1.msra.mxu0 0.0
  %964 = vmatprep.subr.mxu0 0.0
  %965 = vmatpush1.msra.mxu0 0.0
  %966 = vmatprep.subr.mxu0 0.0
  %967 = vmatpush1.msra.mxu0 0.0
  %968 = vmatprep.subr.mxu0 0.0
  %969 = vmatpush1.msra.mxu0 0.0
  %970 = vmatprep.subr.mxu0 0.0
  %971 = vmatpush1.msra.mxu0 0.0
  %972 = vmatprep.subr.mxu0 0.0
  %973 = vmatpush1.msra.mxu0 0.0
  %974 = vmatprep.subr.mxu0 0.0
  %975 = vmatpush1.msra.mxu0 0.0
  %976 = vmatprep.subr.mxu0 0.0
  %v977 = vand.u32 %v533, 4294901760
  %978 = vmatpush1.msra.mxu0 %v977
  %979 = vmatprep.subr.mxu0 0.0
  %980 = vmatpush2.msra.mxu0 0.0
  %981 = vmatprep.subr.mxu0 0.0
  %982 = vmatpush2.msra.mxu0 0.0
  %983 = vmatprep.subr.mxu0 0.0
  %984 = vmatpush2.msra.mxu0 0.0
  %985 = vmatprep.subr.mxu0 0.0
  %986 = vmatpush2.msra.mxu0 0.0
  %987 = vmatprep.subr.mxu0 0.0
  %988 = vmatpush2.msra.mxu0 0.0
  %989 = vmatprep.subr.mxu0 0.0
  %990 = vmatpush2.msra.mxu0 0.0
  %991 = vmatprep.subr.mxu0 0.0
  %992 = vmatpush2.msra.mxu0 0.0
  %993 = vmatprep.subr.mxu0 0.0
  %994 = vmatpush2.msra.mxu0 0.0
  %995 = vmatprep.subr.mxu0 0.0
  %996 = vmatpush2.msra.mxu0 0.0
  %997 = vmatprep.subr.mxu0 0.0
  %998 = vmatpush2.msra.mxu0 0.0
  %999 = vmatprep.subr.mxu0 0.0
  %1000 = vmatpush2.msra.mxu0 0.0
  %1001 = vmatprep.subr.mxu0 0.0
  %1002 = vmatpush2.msra.mxu0 0.0
  %1003 = vmatprep.subr.mxu0 0.0
  %1004 = vmatpush2.msra.mxu0 0.0
  %1005 = vmatprep.subr.mxu0 0.0
  %1006 = vmatpush2.msra.mxu0 0.0
  %1007 = vmatprep.subr.mxu0 0.0
  %1008 = vmatpush2.msra.mxu0 0.0
  %1009 = vmatprep.subr.mxu0 0.0
  %1010 = vmatpush2.msra.mxu0 0.0
  %1011 = vmatprep.mubr.f32.mxu0 0.0
  %v1012 = vand.u32 %v527, 4294901760
  %1013 = vmatmul.mubr.f32.gmra.mxu0 %v1012
  %v1014 = vpop.f32.mrf.mxu0
  %v1015 = vadd.f32 %v937, %v1014
  %v1016 = vpop.f32.mrf.mxu0
  %1017 = vmatprep.mubr.f32.mxu0 0.0
  %v1018 = vand.u32 %v530, 4294901760
  %1019 = vmatmul.mubr.f32.gmra.mxu0 %v1018
  %v1020 = vpop.f32.mrf.mxu0
  %v1021 = vadd.f32 %v943, %v1020
  %v1022 = vpop.f32.mrf.mxu0
  %1023 = vdwg.mxu0
  %v1024 = vld [vmem:[%s4] sm:$0x1]
  %v1026 = vlaneseq
  %v1027 = vshrl.u32 %v1026, 7
  %v1028 = vsub.s32 0, %v1027
  %v1029 = vrot.slane %v1024, %v1028
  %v1031 = vadd.f32 %v1015, %v1029
  %v1032 = vadd.f32 %v1021, %v1029
  %vm1033 = vcmask 15360
  %1034 = vst.msk [vmem:[%s5] sm:$0xff] %vm1033, %v1031
  %vm1035 = vcmask 9216
  %1036 = vst.msk [vmem:[%s5 + $0x8] sm:$0x3] %vm1035, %v1032
  // Predicated region
  $region22: #{tpu_custom_call.1} parent=0 // pred_check
    _
  $region23: #{tpu_custom_call.1} parent=0 // pred_check_branch
    %1038 = sbr.rel (0) target = $region25
  $region24: #{tpu_custom_call.1} parent=0 // pred_region
    _
  $region25: #{tpu_custom_call.1} parent=0 // pred_fallthru
    _
  // Predicated region
  $region26: #{tpu_custom_call.1} parent=0 // pred_check
    _
  $region27: #{tpu_custom_call.1} parent=0 // pred_check_branch
    %1040 = sbr.rel (0) target = $region29
  $region28: #{tpu_custom_call.1} parent=0 // pred_region
    _
  $region29: #{tpu_custom_call.1} parent=0 // pred_fallthru
    _

</llo_original>
